<compile_context>
chip_gen: v7x
topology: tpu7x:2x2x1
jax: 0.10.0
libtpu: 0.0.40
codegen_flags: <defaults>
</compile_context>

<pallas_src>
import jax
import jax.numpy as jnp
from jax import lax
from jax.experimental import pallas as pl
from jax.experimental.pallas import tpu as pltpu


def _round_up(x, m):
    return (x + m - 1) // m * m


def _pad_to(a, axis, target):
    if a.shape[axis] == target:
        return a
    pad = [(0, 0)] * a.ndim
    pad[axis] = (0, target - a.shape[axis])
    return jnp.pad(a, pad)


# ----------------------------------------------------------------------------
# Kernel 1: hoisted fused input projection  gi = x @ Wih_fused + b_ih
# ----------------------------------------------------------------------------
def proj_kernel(x_ref, w_ref, b_ref, o_ref):
    o_ref[...] = (
        jnp.dot(x_ref[...], w_ref[...], preferred_element_type=jnp.float32)
        + b_ref[...]
    )


def input_projection(x_2d, w, b, *, tm_max=256):
    """x_2d: (M, Din), w: (Din, N), b: (1, N) -> (M, N). M must be a multiple of 8."""
    M, Din = x_2d.shape
    N = w.shape[1]
    tm = M if M <= tm_max else tm_max
    M_pad = _round_up(M, tm)
    if M_pad != M:
        x_2d = jnp.pad(x_2d, ((0, M_pad - M), (0, 0)))
    out = pl.pallas_call(
        proj_kernel,
        out_shape=jax.ShapeDtypeStruct((M_pad, N), jnp.float32),
        grid=(M_pad // tm,),
        in_specs=[
            pl.BlockSpec((tm, Din), lambda i: (i, 0)),
            pl.BlockSpec((Din, N), lambda i: (0, 0)),
            pl.BlockSpec((1, N), lambda i: (0, 0)),
        ],
        out_specs=pl.BlockSpec((tm, N), lambda i: (i, 0)),
        compiler_params=pltpu.CompilerParams(dimension_semantics=("parallel",)),
    )(x_2d, w, b)
    return out[:M] if M_pad != M else out


# ----------------------------------------------------------------------------
# Kernel 2: GRU recurrence over T (grid axis, sequential), fused gates.
# ----------------------------------------------------------------------------
def _gru_cell(gi, gh, h, H):
    # PyTorch gate order (r, z, n); bias placement matches nn.GRU.
    r = jax.nn.sigmoid(gi[:, :H] + gh[:, :H])
    z = jax.nn.sigmoid(gi[:, H:2 * H] + gh[:, H:2 * H])
    n = jnp.tanh(gi[:, 2 * H:] + r * gh[:, 2 * H:])
    return n + z * (h - n)  # == (1 - z) * n + z * h


def gru_seq_kernel(gi_ref, whh_ref, bh_ref, out_ref, h_sc):
    t = pl.program_id(0)

    @pl.when(t == 0)
    def _():
        h_sc[...] = jnp.zeros_like(h_sc)

    h = h_sc[...]
    gh = jnp.dot(h, whh_ref[...], preferred_element_type=jnp.float32) + bh_ref[...]
    h_new = _gru_cell(gi_ref[0], gh, h, h.shape[-1])
    h_sc[...] = h_new
    out_ref[0] = h_new


def gru_seq_out_kernel(gi_ref, whh_ref, bh_ref, wo_ref, bo_ref, y_ref, h_sc):
    # Last layer: fuses the Linear + sigmoid head into the per-step body.
    t = pl.program_id(0)

    @pl.when(t == 0)
    def _():
        h_sc[...] = jnp.zeros_like(h_sc)

    h = h_sc[...]
    gh = jnp.dot(h, whh_ref[...], preferred_element_type=jnp.float32) + bh_ref[...]
    h_new = _gru_cell(gi_ref[0], gh, h, h.shape[-1])
    h_sc[...] = h_new
    y = jnp.dot(h_new, wo_ref[...], preferred_element_type=jnp.float32) + bo_ref[...]
    y_ref[0] = jax.nn.sigmoid(y)


def gru_recurrence(gi_tbn, whh, bh):
    T, B_pad, N3 = gi_tbn.shape
    H_pad = whh.shape[0]
    return pl.pallas_call(
        gru_seq_kernel,
        out_shape=jax.ShapeDtypeStruct((T, B_pad, H_pad), jnp.float32),
        grid=(T,),
        in_specs=[
            pl.BlockSpec((1, B_pad, N3), lambda t: (t, 0, 0)),
            pl.BlockSpec((H_pad, N3), lambda t: (0, 0)),
            pl.BlockSpec((1, N3), lambda t: (0, 0)),
        ],
        out_specs=pl.BlockSpec((1, B_pad, H_pad), lambda t: (t, 0, 0)),
        scratch_shapes=[pltpu.VMEM((B_pad, H_pad), jnp.float32)],
        compiler_params=pltpu.CompilerParams(dimension_semantics=("arbitrary",)),
    )(gi_tbn, whh, bh)


def gru_recurrence_out(gi_tbn, whh, bh, wo, bo):
    T, B_pad, N3 = gi_tbn.shape
    H_pad = whh.shape[0]
    O_pad = wo.shape[1]
    return pl.pallas_call(
        gru_seq_out_kernel,
        out_shape=jax.ShapeDtypeStruct((T, B_pad, O_pad), jnp.float32),
        grid=(T,),
        in_specs=[
            pl.BlockSpec((1, B_pad, N3), lambda t: (t, 0, 0)),
            pl.BlockSpec((H_pad, N3), lambda t: (0, 0)),
            pl.BlockSpec((1, N3), lambda t: (0, 0)),
            pl.BlockSpec((H_pad, O_pad), lambda t: (0, 0)),
            pl.BlockSpec((1, O_pad), lambda t: (0, 0)),
        ],
        out_specs=pl.BlockSpec((1, B_pad, O_pad), lambda t: (t, 0, 0)),
        scratch_shapes=[pltpu.VMEM((B_pad, H_pad), jnp.float32)],
        compiler_params=pltpu.CompilerParams(dimension_semantics=("arbitrary",)),
    )(gi_tbn, whh, bh, wo, bo)


# ----------------------------------------------------------------------------
# Parameter packing: PyTorch layout -> fused, lane-padded kernel layout.
# ----------------------------------------------------------------------------
def _pack_gate_w(w_pt, H, H_pad, in_pad):
    """w_pt: (3H, Din) PyTorch-stacked (r,z,n). Returns (in_pad, 3*H_pad)."""
    din = w_pt.shape[1]
    w = jnp.transpose(w_pt).reshape(din, 3, H)
    w = _pad_to(w, 2, H_pad)
    w = _pad_to(w, 0, in_pad)
    return w.reshape(in_pad, 3 * H_pad)


def _pack_gate_b(b_pt, H, H_pad):
    b = b_pt.reshape(3, H)
    b = _pad_to(b, 1, H_pad)
    return b.reshape(1, 3 * H_pad)


# ----------------------------------------------------------------------------
# Forward pass matching Net.forward
# ----------------------------------------------------------------------------
def net_forward(x_btd, params, *, lane=128, sublane=8):
    B, T, D = x_btd.shape
    layers = params["gru_layers"]
    H = layers[0]["w_hh"].shape[1]
    O = params["w_out"].shape[0]
    num_layers = len(layers)

    H_pad = _round_up(H, lane)
    O_pad = _round_up(O, lane)
    B_pad = _round_up(B, sublane)

    # time-major, batch padded to sublane multiple (zero padding is inert)
    x = jnp.transpose(x_btd, (1, 0, 2)).astype(jnp.float32)  # (T, B, D)
    x = _pad_to(x, 1, B_pad)                                 # (T, B_pad, D)

    wo = _pad_to(_pad_to(jnp.transpose(params["w_out"]), 0, H_pad), 1, O_pad)
    bo = _pad_to(params["b_out"].reshape(1, O), 1, O_pad)

    y = None
    for li, layer in enumerate(layers):
        din = x.shape[-1]
        wih = _pack_gate_w(layer["w_ih"], H, H_pad, in_pad=din)
        whh = _pack_gate_w(layer["w_hh"], H, H_pad, in_pad=H_pad)
        bi = _pack_gate_b(layer["b_ih"], H, H_pad)
        bh = _pack_gate_b(layer["b_hh"], H, H_pad)

        # Hoisted input projection: one big MXU matmul over all (T*B) rows.
        gi = input_projection(x.reshape(T * B_pad, din), wih, bi)
        gi = gi.reshape(T, B_pad, 3 * H_pad)

        if li == num_layers - 1:
            y = gru_recurrence_out(gi, whh, bh, wo, bo)  # (T, B_pad, O_pad)
        else:
            x = gru_recurrence(gi, whh, bh)              # (T, B_pad, H_pad)

    y = y[:, :B, :O]                       # strip batch / lane padding
    return jnp.transpose(y, (1, 0, 2))     # (B, T, O)


# ----------------------------------------------------------------------------
# Deterministic parameter init (PyTorch-style uniform(-1/sqrt(H), 1/sqrt(H)))
# ----------------------------------------------------------------------------
def init_params(key, input_size, hidden_size, output_size, num_layers):
    k = 1.0 / float(hidden_size) ** 0.5
    layers = []
    for layer_idx in range(num_layers):
        in_dim = input_size if layer_idx == 0 else hidden_size
        key, k1, k2, k3, k4 = jax.random.split(key, 5)
        layers.append(dict(
            w_ih=jax.random.uniform(k1, (3 * hidden_size, in_dim), jnp.float32, -k, k),
            w_hh=jax.random.uniform(k2, (3 * hidden_size, hidden_size), jnp.float32, -k, k),
            b_ih=jax.random.uniform(k3, (3 * hidden_size,), jnp.float32, -k, k),
            b_hh=jax.random.uniform(k4, (3 * hidden_size,), jnp.float32, -k, k),
        ))
    key, k5, k6 = jax.random.split(key, 3)
    return dict(
        gru_layers=layers,
        w_out=jax.random.uniform(k5, (output_size, hidden_size), jnp.float32, -k, k),
        b_out=jax.random.uniform(k6, (output_size,), jnp.float32, -k, k),
    )


# ----------------------------------------------------------------------------
# Plain-JAX reference (PyTorch GRU semantics) for correctness check
# ----------------------------------------------------------------------------
def net_forward_ref(x_btd, params):
    x = x_btd.astype(jnp.float32)
    for layer in params["gru_layers"]:
        W_ir, W_iz, W_in = jnp.split(layer["w_ih"], 3, axis=0)
        W_hr, W_hz, W_hn = jnp.split(layer["w_hh"], 3, axis=0)
        b_ir, b_iz, b_in = jnp.split(layer["b_ih"], 3)
        b_hr, b_hz, b_hn = jnp.split(layer["b_hh"], 3)
        B = x.shape[0]
        H = W_hr.shape[1]

        def step(h, x_t):
            r = jax.nn.sigmoid(x_t @ W_ir.T + b_ir + h @ W_hr.T + b_hr)
            z = jax.nn.sigmoid(x_t @ W_iz.T + b_iz + h @ W_hz.T + b_hz)
            n = jnp.tanh(x_t @ W_in.T + b_in + r * (h @ W_hn.T + b_hn))
            h_new = (1.0 - z) * n + z * h
            return h_new, h_new

        h0 = jnp.zeros((B, H), jnp.float32)
        _, ys = lax.scan(step, h0, jnp.transpose(x, (1, 0, 2)))
        x = jnp.transpose(ys, (1, 0, 2))
    y = x @ params["w_out"].T + params["b_out"]
    return jax.nn.sigmoid(y)


# ----------------------------------------------------------------------------
if __name__ == "__main__":
    B, T = 2, 8
    input_size, hidden_size, output_size, num_layers = 4, 32, 4, 2

    key = jax.random.PRNGKey(0)
    key, kx, kp = jax.random.split(key, 3)
    x = jax.random.normal(kx, (B, T, input_size), jnp.float32)
    params = init_params(kp, input_size, hidden_size, output_size, num_layers)

    out = jax.block_until_ready(net_forward(x, params))
    assert out.shape == (B, T, output_size), out.shape

    ref = jax.block_until_ready(net_forward_ref(x, params))
    err = float(jnp.max(jnp.abs(out - ref)))
    assert jnp.allclose(out, ref, rtol=2e-4, atol=2e-4), err

    print("KERNEL_OK")
</pallas_src>

<mosaic_0001>
module attributes {stable_mosaic.version = 11 : i64} {
  func.func @proj_kernel(%arg0: i32, %arg1: memref<64x4xf32, #tpu.memory_space<vmem>>, %arg2: memref<4x384xf32, #tpu.memory_space<vmem>>, %arg3: memref<1x384xf32, #tpu.memory_space<vmem>>, %arg4: memref<64x384xf32, #tpu.memory_space<vmem>>) attributes {dimension_semantics = [#tpu.dimension_semantics<parallel>], iteration_bounds = array<i64: 1>, scalar_prefetch = 0 : i64, scratch_operands = 0 : i64, tpu.core_type = #tpu.core_type<tc>, window_params = [{transform_indices = @transform_0, window_bounds = array<i64: 64, 4>}, {pipeline_mode = #tpu.pipeline_mode<synchronous>, transform_indices = @transform_1, window_bounds = array<i64: 4, 384>}, {pipeline_mode = #tpu.pipeline_mode<synchronous>, transform_indices = @transform_2, window_bounds = array<i64: 1, 384>}, {transform_indices = @transform_3, window_bounds = array<i64: 64, 384>}]} {
    %c0 = arith.constant 0 : index
    %c0_0 = arith.constant 0 : index
    %0 = vector.load %arg1[%c0, %c0_0] : memref<64x4xf32, #tpu.memory_space<vmem>>, vector<64x4xf32>
    %c0_1 = arith.constant 0 : index
    %c0_2 = arith.constant 0 : index
    %1 = vector.load %arg2[%c0_1, %c0_2] : memref<4x384xf32, #tpu.memory_space<vmem>>, vector<4x384xf32>
    %cst = arith.constant dense<0.000000e+00> : vector<64x384xf32>
    %2 = tpu.matmul %0, %1, %cst {dimension_numbers = #tpu.dot_dimension_numbers<[1], [0], [0], [1], [0, 0, 1, 1], [], []>} : vector<64x4xf32>, vector<4x384xf32>, vector<64x384xf32> -> vector<64x384xf32>
    %c0_3 = arith.constant 0 : index
    %c0_4 = arith.constant 0 : index
    %3 = vector.load %arg3[%c0_3, %c0_4] : memref<1x384xf32, #tpu.memory_space<vmem>>, vector<1x384xf32>
    %4 = vector.broadcast %3 : vector<1x384xf32> to vector<64x384xf32>
    %5 = arith.addf %2, %4 : vector<64x384xf32>
    %c0_5 = arith.constant 0 : index
    %c0_6 = arith.constant 0 : index
    %6 = vector.load %arg4[%c0_5, %c0_6] : memref<64x384xf32, #tpu.memory_space<vmem>>, vector<64x384xf32>
    tpu.vector_store %arg4[%c0_5, %c0_6], %5 {strides = array<i32>} : memref<64x384xf32, #tpu.memory_space<vmem>>, vector<64x384xf32>,
    return
  }
  func.func @transform_0(%arg0: i32) -> (i32, i32) {
    %c0_i32 = arith.constant 0 : i32
    %c0_i32_0 = arith.constant 0 : i32
    return %arg0, %c0_i32 : i32, i32
  }
  func.func @transform_1(%arg0: i32) -> (i32, i32) {
    %c0_i32 = arith.constant 0 : i32
    %c0_i32_0 = arith.constant 0 : i32
    %c0_i32_1 = arith.constant 0 : i32
    return %c0_i32, %c0_i32_0 : i32, i32
  }
  func.func @transform_2(%arg0: i32) -> (i32, i32) {
    %c0_i32 = arith.constant 0 : i32
    %c0_i32_0 = arith.constant 0 : i32
    %c0_i32_1 = arith.constant 0 : i32
    return %c0_i32, %c0_i32_0 : i32, i32
  }
  func.func @transform_3(%arg0: i32) -> (i32, i32) {
    %c0_i32 = arith.constant 0 : i32
    %c0_i32_0 = arith.constant 0 : i32
    return %arg0, %c0_i32 : i32, i32
  }
}

</mosaic_0001>

<llo_original>
// kernel: tpu_custom_call.1
$region0: #{tpu_custom_call.1}
  #allocation0 [shape = 'u32[]', space=smem, size = 0x4, offset = 0x4, fixed_abs, tag = 'smem constant byte address 0x4 - core index']
  #allocation1 [shape = 'u32[144,128]{1,0:T(1,128)}', space=vmem, size = 0x12000, scoped, tag = 'internal scratch']
  %s0 = inlined_call_operand.vmem [shape: f32[64,4], index: 0, kind: input, shape index: {}]
  %s1 = inlined_call_operand.vmem [shape: f32[4,384], index: 1, kind: input, shape index: {}]
  %s2 = inlined_call_operand.vmem [shape: f32[1,384], index: 2, kind: input, shape index: {}]
  %s3 = inlined_call_operand.hbm [shape: f32[64,384], index: 3, kind: output, shape index: {}]
  %s4 = sld [smem:[#allocation0]]
  $region22: #{tpu_custom_call.1} parent=0
    _
  %s6 = ssub.s32 1, %s4
  %s7 = scalar_select 0, %s6, %s4
  $region1: #{tpu_custom_call.1} parent=0
    #allocation2 [shape = 'u8[98304]{0}', space=vmem, size = 0x18000, scoped, tag = 'output window, operand 0, single buffered']
    #allocation3 [shape = 's32[1]{0}', space=sflag, size = 0x4, scoped, tag = 'scoped memory for tpu_custom_call.1']
    %8 = vsyncpa [#allocation3], 0
    // Predicated region
    $region2: #{tpu_custom_call.1} parent=1 // pred_check
      _
    $region3: #{tpu_custom_call.1} parent=1 // pred_check_branch
      %10 = sbr.rel (0) target = $region5
    $region4: #{tpu_custom_call.1} parent=1 // pred_region
      _
    $region5: #{tpu_custom_call.1} parent=1 // pred_fallthru
      _
    // Predicated region
    $region6: #{tpu_custom_call.1} parent=1 // pred_check
      _
    $region7: #{tpu_custom_call.1} parent=1 // pred_check_branch
      %12 = sbr.rel (0) target = $region9
    $region8: #{tpu_custom_call.1} parent=1 // pred_region
      _
    $region9: #{tpu_custom_call.1} parent=1 // pred_fallthru
      _
    // Predicated region
    $region10: #{tpu_custom_call.1} parent=1 // pred_check
      _
    $region11: #{tpu_custom_call.1} parent=1 // pred_check_branch
      %14 = sbr.rel (0) target = $region13
    $region12: #{tpu_custom_call.1} parent=1 // pred_region
      _
    $region13: #{tpu_custom_call.1} parent=1 // pred_fallthru
      _
    %v15 = vld [vmem:[%s0] sm:$0xff]
    %v16 = vld [vmem:[%s0 + $0x8] sm:$0xff]
    %v17 = vld [vmem:[%s0 + $0x10] sm:$0xff]
    %v18 = vld [vmem:[%s0 + $0x18] sm:$0xff]
    %v19 = vld [vmem:[%s0 + $0x20] sm:$0xff]
    %v20 = vld [vmem:[%s0 + $0x28] sm:$0xff]
    %v21 = vld [vmem:[%s0 + $0x30] sm:$0xff]
    %v22 = vld [vmem:[%s0 + $0x38] sm:$0xff]
    %v23 = vld [vmem:[%s1] sm:$0xff]
    %v24 = vld [vmem:[%s1 + $0x8] sm:$0xf]
    %v25 = vld [vmem:[%s2] sm:$0x7]
    %v27 = vlaneseq
    %v28 = vshrl.u32 %v27, 7
    %v29 = vsub.s32 0, %v28
    %v30 = vrot.slane %v25, %v29
    %v31 = vlaneseq
    %v32 = vshrl.u32 %v31, 7
    %v33 = vsub.s32 1, %v32
    %v34 = vrot.slane %v25, %v33
    %v35 = vlaneseq
    %v36 = vshrl.u32 %v35, 7
    %v37 = vsub.s32 2, %v36
    %v38 = vrot.slane %v25, %v37
    %v44 = vcombine.high %v23, %v23
    %vm45 = vcmask 31744
    %v47 = vsel %vm45, %v15, 0
    %v50 = vsel %vm45, %v16, 0
    %v53 = vsel %vm45, %v17, 0
    %v56 = vsel %vm45, %v18, 0
    %v59 = vsel %vm45, %v19, 0
    %v62 = vsel %vm45, %v20, 0
    %v65 = vsel %vm45, %v21, 0
    %v68 = vsel %vm45, %v22, 0
    %vm70 = vcmask 1043456
    %v71 = vsel %vm70, %v23, 0
    %v73 = vsel %vm70, %v44, 0
    %v75 = vsel %vm70, %v24, 0
    %77 = vmatprep.subr.mxu0 %v73
    %78 = vmatpush1.msra.mxu0 %v71
    %79 = vmatprep.subr.mxu0 0.0
    %80 = vmatpush1.msra.mxu0 0.0
    %81 = vmatprep.subr.mxu0 0.0
    %82 = vmatpush1.msra.mxu0 0.0
    %83 = vmatprep.subr.mxu0 0.0
    %84 = vmatpush1.msra.mxu0 0.0
    %85 = vmatprep.subr.mxu0 0.0
    %86 = vmatpush1.msra.mxu0 0.0
    %87 = vmatprep.subr.mxu0 0.0
    %88 = vmatpush1.msra.mxu0 0.0
    %89 = vmatprep.subr.mxu0 0.0
    %90 = vmatpush1.msra.mxu0 0.0
    %91 = vmatprep.subr.mxu0 0.0
    %92 = vmatpush1.msra.mxu0 0.0
    %93 = vmatprep.subr.mxu0 0.0
    %94 = vmatpush1.msra.mxu0 0.0
    %95 = vmatprep.subr.mxu0 0.0
    %96 = vmatpush1.msra.mxu0 0.0
    %97 = vmatprep.subr.mxu0 0.0
    %98 = vmatpush1.msra.mxu0 0.0
    %99 = vmatprep.subr.mxu0 0.0
    %100 = vmatpush1.msra.mxu0 0.0
    %101 = vmatprep.subr.mxu0 0.0
    %102 = vmatpush1.msra.mxu0 0.0
    %103 = vmatprep.subr.mxu0 0.0
    %104 = vmatpush1.msra.mxu0 0.0
    %105 = vmatprep.subr.mxu0 0.0
    %106 = vmatpush1.msra.mxu0 0.0
    %107 = vmatprep.subr.mxu0 0.0
    %108 = vmatpush1.msra.mxu0 0.0
    %109 = vmatprep.subr.mxu0 0.0
    %110 = vmatpush1.msra.mxu0 0.0
    %111 = vmatprep.subr.mxu0 0.0
    %112 = vmatpush1.msra.mxu0 0.0
    %113 = vmatprep.subr.mxu0 0.0
    %114 = vmatpush1.msra.mxu0 0.0
    %115 = vmatprep.subr.mxu0 0.0
    %116 = vmatpush1.msra.mxu0 0.0
    %117 = vmatprep.subr.mxu0 0.0
    %118 = vmatpush1.msra.mxu0 0.0
    %119 = vmatprep.subr.mxu0 0.0
    %120 = vmatpush1.msra.mxu0 0.0
    %121 = vmatprep.subr.mxu0 0.0
    %122 = vmatpush1.msra.mxu0 0.0
    %123 = vmatprep.subr.mxu0 0.0
    %124 = vmatpush1.msra.mxu0 0.0
    %125 = vmatprep.subr.mxu0 0.0
    %126 = vmatpush1.msra.mxu0 0.0
    %127 = vmatprep.subr.mxu0 0.0
    %128 = vmatpush1.msra.mxu0 0.0
    %129 = vmatprep.subr.mxu0 0.0
    %130 = vmatpush1.msra.mxu0 0.0
    %131 = vmatprep.subr.mxu0 0.0
    %132 = vmatpush1.msra.mxu0 0.0
    %133 = vmatprep.subr.mxu0 0.0
    %134 = vmatpush1.msra.mxu0 0.0
    %135 = vmatprep.subr.mxu0 0.0
    %136 = vmatpush1.msra.mxu0 0.0
    %137 = vmatprep.subr.mxu0 0.0
    %138 = vmatpush1.msra.mxu0 0.0
    %139 = vmatprep.subr.mxu0 0.0
    %140 = vmatpush1.msra.mxu0 0.0
    %141 = vmatprep.mubr.f32.mxu0 0.0
    %142 = vmatmul.mubr.f32.gmra.mrb[0].mxu0 %v47
    %v143 = vpop.f32.mrb[0].mxu0
    %v144 = vadd.f32 %v30, %v143
    %v145 = vpop.f32.mrb[0].mxu0
    %v146 = vadd.f32 %v34, %v145
    %147 = vmatprep.mubr.f32.mxu0 0.0
    %148 = vmatmul.mubr.f32.gmra.mrb[0].mxu0 %v50
    %v149 = vpop.f32.mrb[0].mxu0
    %v150 = vadd.f32 %v30, %v149
    %v151 = vpop.f32.mrb[0].mxu0
    %v152 = vadd.f32 %v34, %v151
    %153 = vmatprep.mubr.f32.mxu0 0.0
    %154 = vmatmul.mubr.f32.gmra.mrb[0].mxu0 %v53
    %v155 = vpop.f32.mrb[0].mxu0
    %v156 = vadd.f32 %v30, %v155
    %v157 = vpop.f32.mrb[0].mxu0
    %v158 = vadd.f32 %v34, %v157
    %159 = vmatprep.mubr.f32.mxu0 0.0
    %160 = vmatmul.mubr.f32.gmra.mrb[0].mxu0 %v56
    %v161 = vpop.f32.mrb[0].mxu0
    %v162 = vadd.f32 %v30, %v161
    %v163 = vpop.f32.mrb[0].mxu0
    %v164 = vadd.f32 %v34, %v163
    %165 = vmatprep.mubr.f32.mxu0 0.0
    %166 = vmatmul.mubr.f32.gmra.mrb[0].mxu0 %v59
    %v167 = vpop.f32.mrb[0].mxu0
    %v168 = vadd.f32 %v30, %v167
    %v169 = vpop.f32.mrb[0].mxu0
    %v170 = vadd.f32 %v34, %v169
    %171 = vmatprep.mubr.f32.mxu0 0.0
    %172 = vmatmul.mubr.f32.gmra.mrb[0].mxu0 %v62
    %v173 = vpop.f32.mrb[0].mxu0
    %v174 = vadd.f32 %v30, %v173
    %v175 = vpop.f32.mrb[0].mxu0
    %v176 = vadd.f32 %v34, %v175
    %177 = vmatprep.mubr.f32.mxu0 0.0
    %178 = vmatmul.mubr.f32.gmra.mrb[0].mxu0 %v65
    %v179 = vpop.f32.mrb[0].mxu0
    %v180 = vadd.f32 %v30, %v179
    %v181 = vpop.f32.mrb[0].mxu0
    %v182 = vadd.f32 %v34, %v181
    %183 = vmatprep.mubr.f32.mxu0 0.0
    %184 = vmatmul.mubr.f32.gmra.mrb[0].mxu0 %v68
    %v185 = vpop.f32.mrb[0].mxu0
    %v186 = vadd.f32 %v30, %v185
    %v187 = vpop.f32.mrb[0].mxu0
    %v188 = vadd.f32 %v34, %v187
    %189 = vdwg.mxu0
    %190 = vmatprep.subr.mxu0 0.0
    %191 = vmatpush1.msra.mxu0 %v75
    %192 = vmatprep.subr.mxu0 0.0
    %193 = vmatpush1.msra.mxu0 0.0
    %194 = vmatprep.subr.mxu0 0.0
    %195 = vmatpush1.msra.mxu0 0.0
    %196 = vmatprep.subr.mxu0 0.0
    %197 = vmatpush1.msra.mxu0 0.0
    %198 = vmatprep.subr.mxu0 0.0
    %199 = vmatpush1.msra.mxu0 0.0
    %200 = vmatprep.subr.mxu0 0.0
    %201 = vmatpush1.msra.mxu0 0.0
    %202 = vmatprep.subr.mxu0 0.0
    %203 = vmatpush1.msra.mxu0 0.0
    %204 = vmatprep.subr.mxu0 0.0
    %205 = vmatpush1.msra.mxu0 0.0
    %206 = vmatprep.subr.mxu0 0.0
    %207 = vmatpush1.msra.mxu0 0.0
    %208 = vmatprep.subr.mxu0 0.0
    %209 = vmatpush1.msra.mxu0 0.0
    %210 = vmatprep.subr.mxu0 0.0
    %211 = vmatpush1.msra.mxu0 0.0
    %212 = vmatprep.subr.mxu0 0.0
    %213 = vmatpush1.msra.mxu0 0.0
    %214 = vmatprep.subr.mxu0 0.0
    %215 = vmatpush1.msra.mxu0 0.0
    %216 = vmatprep.subr.mxu0 0.0
    %217 = vmatpush1.msra.mxu0 0.0
    %218 = vmatprep.subr.mxu0 0.0
    %219 = vmatpush1.msra.mxu0 0.0
    %220 = vmatprep.subr.mxu0 0.0
    %221 = vmatpush1.msra.mxu0 0.0
    %222 = vmatprep.subr.mxu0 0.0
    %223 = vmatpush1.msra.mxu0 0.0
    %224 = vmatprep.subr.mxu0 0.0
    %225 = vmatpush1.msra.mxu0 0.0
    %226 = vmatprep.subr.mxu0 0.0
    %227 = vmatpush1.msra.mxu0 0.0
    %228 = vmatprep.subr.mxu0 0.0
    %229 = vmatpush1.msra.mxu0 0.0
    %230 = vmatprep.subr.mxu0 0.0
    %231 = vmatpush1.msra.mxu0 0.0
    %232 = vmatprep.subr.mxu0 0.0
    %233 = vmatpush1.msra.mxu0 0.0
    %234 = vmatprep.subr.mxu0 0.0
    %235 = vmatpush1.msra.mxu0 0.0
    %236 = vmatprep.subr.mxu0 0.0
    %237 = vmatpush1.msra.mxu0 0.0
    %238 = vmatprep.subr.mxu0 0.0
    %239 = vmatpush1.msra.mxu0 0.0
    %240 = vmatprep.subr.mxu0 0.0
    %241 = vmatpush1.msra.mxu0 0.0
    %242 = vmatprep.subr.mxu0 0.0
    %243 = vmatpush1.msra.mxu0 0.0
    %244 = vmatprep.subr.mxu0 0.0
    %245 = vmatpush1.msra.mxu0 0.0
    %246 = vmatprep.subr.mxu0 0.0
    %247 = vmatpush1.msra.mxu0 0.0
    %248 = vmatprep.subr.mxu0 0.0
    %249 = vmatpush1.msra.mxu0 0.0
    %250 = vmatprep.subr.mxu0 0.0
    %251 = vmatpush1.msra.mxu0 0.0
    %252 = vmatprep.subr.mxu0 0.0
    %253 = vmatpush1.msra.mxu0 0.0
    %254 = vmatprep.mubr.f32.mxu0 0.0
    %255 = vmatmul.mubr.f32.gmra.mrb[0].mxu0 %v47
    %v256 = vpop.f32.mrb[0].mxu0
    %v257 = vadd.f32 %v38, %v256
    %v258 = vpop.f32.mrb[0].mxu0
    %259 = vmatprep.mubr.f32.mxu0 0.0
    %260 = vmatmul.mubr.f32.gmra.mrb[0].mxu0 %v50
    %v261 = vpop.f32.mrb[0].mxu0
    %v262 = vadd.f32 %v38, %v261
    %v263 = vpop.f32.mrb[0].mxu0
    %264 = vmatprep.mubr.f32.mxu0 0.0
    %265 = vmatmul.mubr.f32.gmra.mrb[0].mxu0 %v53
    %v266 = vpop.f32.mrb[0].mxu0
    %v267 = vadd.f32 %v38, %v266
    %v268 = vpop.f32.mrb[0].mxu0
    %269 = vmatprep.mubr.f32.mxu0 0.0
    %270 = vmatmul.mubr.f32.gmra.mrb[0].mxu0 %v56
    %v271 = vpop.f32.mrb[0].mxu0
    %v272 = vadd.f32 %v38, %v271
    %v273 = vpop.f32.mrb[0].mxu0
    %274 = vmatprep.mubr.f32.mxu0 0.0
    %275 = vmatmul.mubr.f32.gmra.mrb[0].mxu0 %v59
    %v276 = vpop.f32.mrb[0].mxu0
    %v277 = vadd.f32 %v38, %v276
    %v278 = vpop.f32.mrb[0].mxu0
    %279 = vmatprep.mubr.f32.mxu0 0.0
    %280 = vmatmul.mubr.f32.gmra.mrb[0].mxu0 %v62
    %v281 = vpop.f32.mrb[0].mxu0
    %v282 = vadd.f32 %v38, %v281
    %v283 = vpop.f32.mrb[0].mxu0
    %284 = vmatprep.mubr.f32.mxu0 0.0
    %285 = vmatmul.mubr.f32.gmra.mrb[0].mxu0 %v65
    %v286 = vpop.f32.mrb[0].mxu0
    %v287 = vadd.f32 %v38, %v286
    %v288 = vpop.f32.mrb[0].mxu0
    %289 = vmatprep.mubr.f32.mxu0 0.0
    %290 = vmatmul.mubr.f32.gmra.mrb[0].mxu0 %v68
    %v291 = vpop.f32.mrb[0].mxu0
    %v292 = vadd.f32 %v38, %v291
    %v293 = vpop.f32.mrb[0].mxu0
    %294 = vdwg.mxu0
    %295 = vst [vmem:[#allocation2] sm:$0xff] %v144
    %296 = vst [vmem:[#allocation2 + $0x8] sm:$0xff] %v146
    %297 = vst [vmem:[#allocation2 + $0x10] sm:$0xff] %v257
    %298 = vst [vmem:[#allocation2 + $0x18] sm:$0xff] %v150
    %299 = vst [vmem:[#allocation2 + $0x20] sm:$0xff] %v152
    %300 = vst [vmem:[#allocation2 + $0x28] sm:$0xff] %v262
    %301 = vst [vmem:[#allocation2 + $0x30] sm:$0xff] %v156
    %302 = vst [vmem:[#allocation2 + $0x38] sm:$0xff] %v158
    %303 = vst [vmem:[#allocation2 + $0x40] sm:$0xff] %v267
    %304 = vst [vmem:[#allocation2 + $0x48] sm:$0xff] %v162
    %305 = vst [vmem:[#allocation2 + $0x50] sm:$0xff] %v164
    %306 = vst [vmem:[#allocation2 + $0x58] sm:$0xff] %v272
    %307 = vst [vmem:[#allocation2 + $0x60] sm:$0xff] %v168
    %308 = vst [vmem:[#allocation2 + $0x68] sm:$0xff] %v170
    %309 = vst [vmem:[#allocation2 + $0x70] sm:$0xff] %v277
    %310 = vst [vmem:[#allocation2 + $0x78] sm:$0xff] %v174
    %311 = vst [vmem:[#allocation2 + $0x80] sm:$0xff] %v176
    %312 = vst [vmem:[#allocation2 + $0x88] sm:$0xff] %v282
    %313 = vst [vmem:[#allocation2 + $0x90] sm:$0xff] %v180
    %314 = vst [vmem:[#allocation2 + $0x98] sm:$0xff] %v182
    %315 = vst [vmem:[#allocation2 + $0xa0] sm:$0xff] %v287
    %316 = vst [vmem:[#allocation2 + $0xa8] sm:$0xff] %v186
    %317 = vst [vmem:[#allocation2 + $0xb0] sm:$0xff] %v188
    %318 = vst [vmem:[#allocation2 + $0xb8] sm:$0xff] %v292
    // Predicated region
    $region14: #{tpu_custom_call.1} parent=1 // pred_check
      _
    $region15: #{tpu_custom_call.1} parent=1 // pred_check_branch
      %320 = sbr.rel (0) target = $region17
    $region16: #{tpu_custom_call.1} parent=1 // pred_region
      %s322 = ssub.s32 3072, 3072
      %323 = vsyncadd [#allocation3], %s322
      %s324 = sshll.u32 [#allocation2], 4
      %s325 = int_to_ptr.vmem [resolvable:$true] %s324
      %330 = dma.vmem_to_hbm [thread:$0]  %s325, 3072, %s3, [#allocation3], 384, 384, 24
    $region17: #{tpu_custom_call.1} parent=1 // pred_fallthru
      _
    // Predicated region
    $region18: #{tpu_custom_call.1} parent=1 // pred_check
      _
    $region19: #{tpu_custom_call.1} parent=1 // pred_check_branch
      %332 = sbr.rel (0) target = $region21
    $region20: #{tpu_custom_call.1} parent=1 // pred_region
      %333 = dma.done [#allocation3], 3072
    $region21: #{tpu_custom_call.1} parent=1 // pred_fallthru
      _
    %334 = vsyncpa [#allocation3], 1

</llo_original>
